<compile_context>
chip_gen: v7x
topology: tpu7x:2x2x1
jax: 0.10.0
libtpu: 0.0.40
codegen_flags: <defaults>
</compile_context>

<pallas_src>
import functools

import jax
import jax.numpy as jnp
from jax import lax
from jax.experimental import pallas as pl
from jax.experimental.pallas import tpu as pltpu


def _round_up(x, m):
    return (x + m - 1) // m * m


def _round_down(x, m):
    return (x // m) * m


def _vmem_capacity_bytes():
    """Best-effort per-core VMEM capacity query; conservative fallback."""
    try:
        info = pltpu.get_tpu_info()
        cap = getattr(info, "vmem_capacity_bytes", None)
        if cap:
            return int(cap)
    except Exception:
        pass
    return 64 * 1024 * 1024  # v7x per-TC physical — safe everywhere


def _make_gram_kernel(tk, hw, acc_in_out, cast_to_bf16):
    """Specialize the kernel on static tiling facts (ragged tile, acc path)."""
    ragged = (hw % tk) != 0

    def kernel(f_ref, o_ref, *scratch):
        # f_ref:  (c_pad, tk)     feature tile for the current (batch, k) step
        # o_ref:  (c_pad, c_pad)  gram block, resident across the k axis
        # scratch[0] (optional):  f32 accumulator for sub-f32 outputs
        acc_ref = o_ref if acc_in_out else scratch[0]
        k = pl.program_id(1)

        @pl.when(k == 0)
        def _init():
            acc_ref[...] = jnp.zeros_like(acc_ref)

        f = f_ref[...]
        if ragged:
            # Last k tile extends past HW; out-of-bounds lanes are undefined,
            # so zero them before the contraction.  (Full-width tiles compare
            # against hw - k*tk >= tk, i.e. the mask is all-true for them.)
            col = lax.broadcasted_iota(jnp.int32, f.shape, 1)
            f = jnp.where(col < (hw - k * tk), f, jnp.zeros_like(f))
        if cast_to_bf16:
            f = f.astype(jnp.bfloat16)

        # F @ F^T as a contraction over the last axis of both operands:
        # no materialized transpose, f32 accumulation on the MXU.
        acc_ref[...] += lax.dot_general(
            f, f,
            dimension_numbers=(((1,), (1,)), ((), ())),
            preferred_element_type=jnp.float32,
        )

        if not acc_in_out:
            @pl.when(k == pl.num_programs(1) - 1)
            def _finalize():
                o_ref[...] = acc_ref[...].astype(o_ref.dtype)

    return kernel


@functools.partial(jax.jit, static_argnames=("max_tk", "cast_to_bf16"))
def gram_matrix(x, *, max_tk=None, cast_to_bf16=False):
    """x: (b, c, h, w) -> (b, 1, c, c), matching GramMatrix.forward."""
    b, c, h, w = x.shape
    hw = h * w
    itemsize = jnp.dtype(x.dtype).itemsize
    out_dtype = x.dtype
    acc_in_out = (out_dtype == jnp.float32)

    feature = x.reshape(b, c, hw)  # glue: same as torch .view (no copy)

    # --- channel padding: dtype-aware, skipped when already aligned ---------
    c_mult = {4: 8, 2: 16, 1: 32}.get(itemsize, 8)
    c_pad = _round_up(c, c_mult)
    if c_pad != c:
        # Zero channel rows contribute zero rows/cols to F @ F^T; stripped below.
        feature = jnp.pad(feature, ((0, 0), (0, c_pad - c), (0, 0)))

    # --- generation-aware VMEM budget ----------------------------------------
    cap = _vmem_capacity_bytes()
    cap = min(max(cap, 32 << 20), 128 << 20)
    vmem_limit = min((cap * 3) // 4, 96 << 20)   # <=48 MiB v7x, <=96 MiB v5e/v6e
    budget = vmem_limit - (6 << 20)              # headroom for compiler scratch

    # Fixed resident footprint: double-buffered output block (+ optional acc).
    fixed = 2 * c_pad * c_pad * jnp.dtype(out_dtype).itemsize
    if not acc_in_out:
        fixed += c_pad * c_pad * 4
    avail = max(budget - fixed, 2 * c_pad * 128 * itemsize)
    tk_cap = avail // (2 * c_pad * itemsize)     # double-buffered (c_pad, tk) input
    if max_tk is not None:
        tk_cap = min(tk_cap, max_tk)

    if hw <= max(tk_cap, 128):
        tk, num_k = hw, 1                        # single k step, full-extent block
    else:
        if tk_cap >= 512:
            tk = _round_down(tk_cap, 512)
        else:
            tk = max(_round_down(tk_cap, 128), 128)
        num_k = (hw + tk - 1) // tk              # last tile may be ragged (masked)

    kernel = _make_gram_kernel(tk, hw, acc_in_out, cast_to_bf16)
    scratch = [] if acc_in_out else [pltpu.VMEM((c_pad, c_pad), jnp.float32)]

    gram = pl.pallas_call(
        kernel,
        out_shape=jax.ShapeDtypeStruct((b, c_pad, c_pad), out_dtype),
        grid_spec=pltpu.PrefetchScalarGridSpec(
            num_scalar_prefetch=0,
            grid=(b, num_k),
            in_specs=[
                pl.BlockSpec((pl.Squeezed(), c_pad, tk),
                             lambda i, k: (i, 0, k)),
            ],
            out_specs=pl.BlockSpec((pl.Squeezed(), c_pad, c_pad),
                                   lambda i, k: (i, 0, 0)),
            scratch_shapes=scratch,
        ),
        compiler_params=pltpu.CompilerParams(
            dimension_semantics=("parallel", "arbitrary"),
            vmem_limit_bytes=int(vmem_limit),
        ),
    )(feature)

    if c_pad != c:
        gram = gram[:, :c, :c]
    return gram.reshape(b, 1, c, c)  # glue: same as torch .view(b, 1, c, c)


if __name__ == "__main__":
    key = jax.random.PRNGKey(0)

    # Shape implied by the module's forward: NCHW.
    x = jax.random.normal(key, (2, 4, 16, 16), dtype=jnp.float32)
    out = gram_matrix(x)
    jax.block_until_ready(out)
    feat = x.reshape(2, 4, 16 * 16)
    ref = jnp.einsum("bcn,bdn->bcd", feat, feat).reshape(2, 1, 4, 4)
    assert out.shape == (2, 1, 4, 4), out.shape
    assert jnp.allclose(out, ref, atol=1e-4, rtol=1e-4)

    # Multi-step k accumulation (tk forced small, evenly dividing HW).
    x2 = jax.random.normal(jax.random.PRNGKey(0), (1, 6, 32, 32),
                           dtype=jnp.float32)
    out2 = gram_matrix(x2, max_tk=512)
    jax.block_until_ready(out2)
    feat2 = x2.reshape(1, 6, 32 * 32)
    ref2 = jnp.einsum("bcn,bdn->bcd", feat2, feat2).reshape(1, 1, 6, 6)
    assert out2.shape == (1, 1, 6, 6), out2.shape
    assert jnp.allclose(out2, ref2, atol=1e-3, rtol=1e-4)

    # Ragged last k tile (hw=324, tk=128) + channels not a multiple of 8.
    x3 = jax.random.normal(jax.random.PRNGKey(1), (2, 5, 18, 18),
                           dtype=jnp.float32)
    out3 = gram_matrix(x3, max_tk=128)
    jax.block_until_ready(out3)
    feat3 = x3.reshape(2, 5, 18 * 18)
    ref3 = jnp.einsum("bcn,bdn->bcd", feat3, feat3).reshape(2, 1, 5, 5)
    assert out3.shape == (2, 1, 5, 5), out3.shape
    assert jnp.allclose(out3, ref3, atol=1e-3, rtol=1e-4)

    # bf16 input exercises the f32-scratch accumulation + finalize cast path.
    x4 = jax.random.normal(jax.random.PRNGKey(2), (1, 8, 16, 16),
                           dtype=jnp.float32).astype(jnp.bfloat16)
    out4 = gram_matrix(x4, max_tk=128)
    jax.block_until_ready(out4)
    feat4 = x4.astype(jnp.float32).reshape(1, 8, 16 * 16)
    ref4 = jnp.einsum("bcn,bdn->bcd", feat4, feat4).reshape(1, 1, 8, 8)
    assert out4.shape == (1, 1, 8, 8), out4.shape
    assert jnp.allclose(out4.astype(jnp.float32), ref4, atol=0.5, rtol=2e-2)

    print("KERNEL_OK")
</pallas_src>

<mosaic_0001>
module attributes {stable_mosaic.version = 11 : i64} {
  func.func @kernel(%arg0: i32, %arg1: i32, %arg2: memref<1x8x256xf32, #tpu.memory_space<vmem>>, %arg3: memref<1x8x8xf32, #tpu.memory_space<vmem>>) attributes {dimension_semantics = [#tpu.dimension_semantics<parallel>, #tpu.dimension_semantics<arbitrary>], iteration_bounds = array<i64: 2, 1>, scalar_prefetch = 0 : i64, scratch_operands = 0 : i64, tpu.core_type = #tpu.core_type<tc>, window_params = [{transform_indices = @transform_0, window_bounds = array<i64: 1, 8, 256>}, {transform_indices = @transform_1, window_bounds = array<i64: 1, 8, 8>}]} {
    %c0_i32 = arith.constant 0 : i32
    %0 = arith.cmpi eq, %arg1, %c0_i32 : i32
    %1 = arith.extui %0 : i1 to i32
    %c0_i32_0 = arith.constant 0 : i32
    %2 = arith.cmpi ne, %1, %c0_i32_0 : i32
    scf.if %2 {
      %cst_9 = arith.constant 0.000000e+00 : f32
      %12 = vector.broadcast %cst_9 : f32 to vector<8x8xf32>
      %c0_10 = arith.constant 0 : index
      %c0_11 = arith.constant 0 : index
      %c0_12 = arith.constant 0 : index
      %13 = vector.load %arg3[%c0_10, %c0_11, %c0_12] : memref<1x8x8xf32, #tpu.memory_space<vmem>>, vector<1x8x8xf32>
      %14 = vector.shape_cast %13 : vector<1x8x8xf32> to vector<8x8xf32>
      %15 = vector.shape_cast %12 : vector<8x8xf32> to vector<1x8x8xf32>
      tpu.vector_store %arg3[%c0_10, %c0_11, %c0_12], %15 {strides = array<i32>} : memref<1x8x8xf32, #tpu.memory_space<vmem>>, vector<1x8x8xf32>,
    } else {
    }
    %c0 = arith.constant 0 : index
    %c0_1 = arith.constant 0 : index
    %c0_2 = arith.constant 0 : index
    %3 = vector.load %arg2[%c0, %c0_1, %c0_2] : memref<1x8x256xf32, #tpu.memory_space<vmem>>, vector<1x8x256xf32>
    %4 = vector.shape_cast %3 : vector<1x8x256xf32> to vector<8x256xf32>
    %c0_3 = arith.constant 0 : index
    %c0_4 = arith.constant 0 : index
    %c0_5 = arith.constant 0 : index
    %5 = vector.load %arg3[%c0_3, %c0_4, %c0_5] : memref<1x8x8xf32, #tpu.memory_space<vmem>>, vector<1x8x8xf32>
    %6 = vector.shape_cast %5 : vector<1x8x8xf32> to vector<8x8xf32>
    %cst = arith.constant dense<0.000000e+00> : vector<8x8xf32>
    %7 = tpu.matmul %4, %4, %cst {dimension_numbers = #tpu.dot_dimension_numbers<[1], [1], [0], [0], [0, 0, 1, 0], [], []>} : vector<8x256xf32>, vector<8x256xf32>, vector<8x8xf32> -> vector<8x8xf32>
    %8 = arith.addf %6, %7 : vector<8x8xf32>
    %c0_6 = arith.constant 0 : index
    %c0_7 = arith.constant 0 : index
    %c0_8 = arith.constant 0 : index
    %9 = vector.load %arg3[%c0_6, %c0_7, %c0_8] : memref<1x8x8xf32, #tpu.memory_space<vmem>>, vector<1x8x8xf32>
    %10 = vector.shape_cast %9 : vector<1x8x8xf32> to vector<8x8xf32>
    %11 = vector.shape_cast %8 : vector<8x8xf32> to vector<1x8x8xf32>
    tpu.vector_store %arg3[%c0_6, %c0_7, %c0_8], %11 {strides = array<i32>} : memref<1x8x8xf32, #tpu.memory_space<vmem>>, vector<1x8x8xf32>,
    return
  }
  func.func @transform_0(%arg0: i32, %arg1: i32) -> (i32, i32, i32) {
    %c0_i32 = arith.constant 0 : i32
    %c0_i32_0 = arith.constant 0 : i32
    return %arg0, %c0_i32, %arg1 : i32, i32, i32
  }
  func.func @transform_1(%arg0: i32, %arg1: i32) -> (i32, i32, i32) {
    %c0_i32 = arith.constant 0 : i32
    %c0_i32_0 = arith.constant 0 : i32
    %c0_i32_1 = arith.constant 0 : i32
    return %arg0, %c0_i32, %c0_i32_0 : i32, i32, i32
  }
}

</mosaic_0001>

<llo_original>
// kernel: gram_matrix.1
$region0: #{gram_matrix.1}
  #allocation0 [shape = 'u32[]', space=smem, size = 0x4, offset = 0x4, fixed_abs, tag = 'smem constant byte address 0x4 - core index']
  #allocation1 [shape = 'u32[144,128]{1,0:T(1,128)}', space=vmem, size = 0x12000, scoped, tag = 'internal scratch']
  %s0 = inlined_call_operand.vmem [shape: f32[2,8,256], index: 0, kind: input, shape index: {}]
  %s1 = inlined_call_operand.vmem [shape: f32[2,8,8], index: 1, kind: output, shape index: {}]
  %s2 = sld [smem:[#allocation0]]
  $region41: #{gram_matrix.1} parent=0
    _
  %s4 = ssub.s32 1, %s2
  %s5 = scalar_select 0, %s4, %s2
  loop: start=0, step=1, limit=4
  $region2: #{gram_matrix.1} parent=0 // loop_pre_header
    _
  $region3: #{gram_matrix.1} parent=0 // loop_header
    %s7 = sphi 0, %s11
    %p8 = scmp.ge.s32.totalorder %s7, 4
    %s14 = sphi 0, %s26
    %s15 = sphi 0, %s22
    %s16 = sphi 0, %s14
    %s17 = sphi 0, %s15
    %s18 = sphi 0, %s16
    %s19 = sphi 0, %s17
    %s31 = sphi 0, %s33
    %s34 = sphi 0, %s31
    %s35 = sphi 0, %s34
    %s51 = sphi 0, %s35
    %s57 = sphi 0, %s59
    %s60 = sphi 0, %s57
    %s61 = sphi 0, %s60
    %s77 = sphi 0, %s61
  $region4: #{gram_matrix.1} parent=0 // loop_header_branch
    %10 = sbr.rel (%p8) target = $region8
  $region5: #{gram_matrix.1} parent=0 // loop_body
    %s12 = ssub.s32 %s7, 1
    %s13 = ssub.s32 %s7, 2
    %s20 = sadd.s32 1, %s15
    %p21 = scmp.ge.s32.totalorder %s20, 1
    %s22 = scalar_select %p21, 0, %s20
    %s23 = sadd.s32 1, %s14
    %s24 = scalar_select %p21, %s23, %s14
    %p25 = scmp.ge.s32.totalorder %s24, 2
    %s26 = scalar_select %p25, 0, %s24
    %s27 = ssub.s32 %s14, %s26
    %s28 = ssub.s32 %s15, %s22
    %s29 = sor.u32 %s27, %s28
    %p30 = scmp.eq.s32.totalorder %s29, 0
    %s32 = sadd.s32 %s31, 1
    %s33 = scalar_select %p30, %s31, %s32
    %p36 = pneg %p30
    %p37 = scmp.eq.s32.totalorder %s7, 1
    %p38 = por %p36, %p37
    %p39 = scmp.ne.s32.totalorder %s31, %s34
    %p40 = scmp.eq.s32.totalorder %s7, 0
    %p41 = por %p39, %p40
    %p42 = scmp.ne.s32.totalorder %s31, %s34
    %p43 = scmp.eq.s32.totalorder %s12, 1
    %p44 = por %p42, %p43
    %p45 = scmp.ne.s32.totalorder %s34, %s35
    %p46 = scmp.eq.s32.totalorder %s12, 0
    %p47 = por %p45, %p46
    %p48 = scmp.ne.s32.totalorder %s34, %s35
    %p49 = scmp.eq.s32.totalorder %s13, 1
    %p50 = por %p48, %p49
    %p52 = scmp.ne.s32.totalorder %s35, %s51
    %p53 = scmp.eq.s32.totalorder %s13, 0
    %p54 = por %p52, %p53
    %s55 = ssub.s32 %s14, %s26
    %p56 = scmp.eq.s32.totalorder %s55, 0
    %s58 = sadd.s32 %s57, 1
    %s59 = scalar_select %p56, %s57, %s58
    %p62 = pneg %p56
    %p63 = scmp.eq.s32.totalorder %s7, 1
    %p64 = por %p62, %p63
    %p65 = scmp.ne.s32.totalorder %s57, %s60
    %p66 = scmp.eq.s32.totalorder %s7, 0
    %p67 = por %p65, %p66
    %p68 = scmp.ne.s32.totalorder %s57, %s60
    %p69 = scmp.eq.s32.totalorder %s12, 1
    %p70 = por %p68, %p69
    %p71 = scmp.ne.s32.totalorder %s60, %s61
    %p72 = scmp.eq.s32.totalorder %s12, 0
    %p73 = por %p71, %p72
    %p74 = scmp.ne.s32.totalorder %s60, %s61
    %p75 = scmp.eq.s32.totalorder %s13, 1
    %p76 = por %p74, %p75
    %p78 = scmp.ne.s32.totalorder %s61, %s77
    %p79 = scmp.eq.s32.totalorder %s13, 0
    %p80 = por %p78, %p79
    %p81 = scmp.le.s32.totalorder 1, %s7
    %p82 = scmp.lt.s32.totalorder %s7, 3
    %p83 = pnand %p81, %p82
    %p84 = pneg %p83
    // Predicated region
    $region9: #{gram_matrix.1} parent=5 // pred_check
      _
    $region10: #{gram_matrix.1} parent=5 // pred_check_branch
      %86 = sbr.rel (%p83) target = $region12
    $region11: #{gram_matrix.1} parent=5 // pred_region
      %s87 = ssub.s32 %s7, 1
    $region12: #{gram_matrix.1} parent=5 // pred_fallthru
      _
    %p88 = scmp.lt.s32.totalorder %s7, 2
    // Predicated region
    $region13: #{gram_matrix.1} parent=5 // pred_check
      %p89 = pneg %p88
    $region14: #{gram_matrix.1} parent=5 // pred_check_branch
      %91 = sbr.rel (%p89) target = $region16
    $region15: #{gram_matrix.1} parent=5 // pred_region
      // Predicated region
      $region17: #{gram_matrix.1} parent=15 // pred_check
        %p92 = pneg %p41
      $region18: #{gram_matrix.1} parent=15 // pred_check_branch
        %94 = sbr.rel (%p92) target = $region20
      $region19: #{gram_matrix.1} parent=15 // pred_region
        %s95 = smul.u32 2, %s15
        %p96 = scmp.lt.s32.totalorder %s14, 1
        %s97 = scalar_select %p96, %s14, 1
        %p98 = scmp.lt.s32.totalorder %s95, 1
        %s99 = scalar_select %p98, %s95, 1
        %s100 = smul.addr %s97, 2
        %s101 = sadd.s32 %s99, %s100
        %s102 = smul.addr %s101, 8
        %s103 = scalar_lea.vmem %s0, %s102
        %s104 = smul.u32 2, %s15
      $region20: #{gram_matrix.1} parent=15 // pred_fallthru
        _
    $region16: #{gram_matrix.1} parent=5 // pred_fallthru
      _
    %p105 = scmp.le.s32.totalorder 1, %s7
    %p106 = scmp.lt.s32.totalorder %s7, 3
    %p107 = pnand %p105, %p106
    %p108 = pneg %p107
    // Predicated region
    $region21: #{gram_matrix.1} parent=5 // pred_check
      _
    $region22: #{gram_matrix.1} parent=5 // pred_check_branch
      %110 = sbr.rel (%p107) target = $region24
    $region23: #{gram_matrix.1} parent=5 // pred_region
      %s111 = ssub.s32 %s7, 1
      %s112 = smul.u32 2, %s17
      %p113 = scmp.lt.s32.totalorder %s16, 1
      %s114 = scalar_select %p113, %s16, 1
      %p115 = scmp.lt.s32.totalorder %s112, 1
      %s116 = scalar_select %p115, %s112, 1
      %s117 = smul.addr %s114, 2
      %s118 = sadd.s32 %s116, %s117
      %s119 = smul.addr %s118, 8
      %s120 = scalar_lea.vmem %s0, %s119
      %p121 = pneg %p47
      %p122 = pneg %p44
      %p123 = pneg %p73
      %p124 = pneg %p70
      %p125 = scmp.lt.s32.totalorder %s16, 1
      %s126 = scalar_select %p125, %s16, 1
      %s127 = smul.addr %s126, 8
      %s128 = scalar_lea.vmem %s1, %s127
      %s129 = smul.u32 2, %s17
      %p130 = scmp.lt.s32.totalorder %s16, 1
      %s131 = scalar_select %p130, %s16, 1
      %p132 = scmp.lt.s32.totalorder %s129, 1
      %s133 = scalar_select %p132, %s129, 1
      %s134 = smul.addr %s131, 2
      %s135 = sadd.s32 %s133, %s134
      %s136 = smul.addr %s135, 8
      %s137 = scalar_lea.vmem %s0, %s136
      %s138 = smul.u32 2, %s17
      %p139 = scmp.lt.s32.totalorder %s16, 1
      %s140 = scalar_select %p139, %s16, 1
      %s141 = smul.addr %s140, 8
      %s142 = scalar_lea.vmem %s1, %s141
      %p143 = scmp.eq.s32.totalorder %s17, 0
      // Predicated region
      $region25: #{gram_matrix.1} parent=23 // pred_check
        %p144 = pneg %p143
      $region26: #{gram_matrix.1} parent=23 // pred_check_branch
        %146 = sbr.rel (%p144) target = $region28
      $region27: #{gram_matrix.1} parent=23 // pred_region
        %vm147 = vcmask 64512
        %148 = vst.msk [vmem:[%s142] sm:$0xff] %vm147, 0.0
      $region28: #{gram_matrix.1} parent=23 // pred_fallthru
        _
      %v149 = vld [vmem:[%s137] sm:$0xff]
      %v150 = vld [vmem:[%s137 + $0x8] sm:$0xff]
      %v151 = vld [vmem:[%s142] sm:$0xff]
      %152 = vmatprep.subr.mxu0 %v150
      %153 = vmatpush1.xpose.msra.mxu0 %v149
      %154 = vmatprep.subr.mxu0 0.0
      %155 = vmatpush1.xpose.msra.mxu0 0.0
      %156 = vmatprep.subr.mxu0 0.0
      %157 = vmatpush1.xpose.msra.mxu0 0.0
      %158 = vmatprep.subr.mxu0 0.0
      %159 = vmatpush1.xpose.msra.mxu0 0.0
      %160 = vmatprep.subr.mxu0 0.0
      %161 = vmatpush1.xpose.msra.mxu0 0.0
      %162 = vmatprep.subr.mxu0 0.0
      %163 = vmatpush1.xpose.msra.mxu0 0.0
      %164 = vmatprep.subr.mxu0 0.0
      %165 = vmatpush1.xpose.msra.mxu0 0.0
      %166 = vmatprep.subr.mxu0 0.0
      %167 = vmatpush1.xpose.msra.mxu0 0.0
      %168 = vmatprep.subr.mxu0 0.0
      %169 = vmatpush1.xpose.msra.mxu0 0.0
      %170 = vmatprep.subr.mxu0 0.0
      %171 = vmatpush1.xpose.msra.mxu0 0.0
      %172 = vmatprep.subr.mxu0 0.0
      %173 = vmatpush1.xpose.msra.mxu0 0.0
      %174 = vmatprep.subr.mxu0 0.0
      %175 = vmatpush1.xpose.msra.mxu0 0.0
      %176 = vmatprep.subr.mxu0 0.0
      %177 = vmatpush1.xpose.msra.mxu0 0.0
      %178 = vmatprep.subr.mxu0 0.0
      %179 = vmatpush1.xpose.msra.mxu0 0.0
      %180 = vmatprep.subr.mxu0 0.0
      %181 = vmatpush1.xpose.msra.mxu0 0.0
      %182 = vmatprep.subr.mxu0 0.0
      %183 = vmatpush1.xpose.msra.mxu0 0.0
      %184 = vmatprep.subr.mxu0 0.0
      %185 = vmatpush1.xpose.msra.mxu0 0.0
      %186 = vmatprep.subr.mxu0 0.0
      %187 = vmatpush1.xpose.msra.mxu0 0.0
      %188 = vmatprep.subr.mxu0 0.0
      %189 = vmatpush1.xpose.msra.mxu0 0.0
      %190 = vmatprep.subr.mxu0 0.0
      %191 = vmatpush1.xpose.msra.mxu0 0.0
      %192 = vmatprep.subr.mxu0 0.0
      %193 = vmatpush1.xpose.msra.mxu0 0.0
      %194 = vmatprep.subr.mxu0 0.0
      %195 = vmatpush1.xpose.msra.mxu0 0.0
      %196 = vmatprep.subr.mxu0 0.0
      %197 = vmatpush1.xpose.msra.mxu0 0.0
      %198 = vmatprep.subr.mxu0 0.0
      %199 = vmatpush1.xpose.msra.mxu0 0.0
      %200 = vmatprep.subr.mxu0 0.0
      %201 = vmatpush1.xpose.msra.mxu0 0.0
      %202 = vmatprep.subr.mxu0 0.0
      %203 = vmatpush1.xpose.msra.mxu0 0.0
      %204 = vmatprep.subr.mxu0 0.0
      %205 = vmatpush1.xpose.msra.mxu0 0.0
      %206 = vmatprep.subr.mxu0 0.0
      %207 = vmatpush1.xpose.msra.mxu0 0.0
      %208 = vmatprep.subr.mxu0 0.0
      %209 = vmatpush1.xpose.msra.mxu0 0.0
      %210 = vmatprep.subr.mxu0 0.0
      %211 = vmatpush1.xpose.msra.mxu0 0.0
      %212 = vmatprep.subr.mxu0 0.0
      %213 = vmatpush1.xpose.msra.mxu0 0.0
      %214 = vmatprep.subr.mxu0 0.0
      %215 = vmatpush1.xpose.msra.mxu0 0.0
      %216 = vmatprep.mubr.f32.mxu0 %v150
      %217 = vmatmul.mubr.f32.gmra.mrb[0].mxu0 %v149
      %v218 = vpop.f32.mrb[0].mxu0
      %v219 = vadd.f32 0.0, %v218
      %v220 = vpop.f32.mrb[0].mxu0
      %221 = vdwg.mxu0
      %v222 = vadd.f32 %v151, %v219
      %vm223 = vcmask 64512
      %224 = vst.msk [vmem:[%s142] sm:$0xff] %vm223, %v222
      %p225 = scmp.lt.s32.totalorder %s16, 1
      %s226 = scalar_select %p225, %s16, 1
      %s227 = smul.addr %s226, 8
      %s228 = scalar_lea.vmem %s1, %s227
      // Predicated region
      $region29: #{gram_matrix.1} parent=23 // pred_check
        %p229 = pneg %p70
      $region30: #{gram_matrix.1} parent=23 // pred_check_branch
        %231 = sbr.rel (%p229) target = $region32
      $region31: #{gram_matrix.1} parent=23 // pred_region
        _
      $region32: #{gram_matrix.1} parent=23 // pred_fallthru
        _
    $region24: #{gram_matrix.1} parent=5 // pred_fallthru
      _
    %p232 = scmp.le.s32.totalorder 2, %s7
    // Predicated region
    $region33: #{gram_matrix.1} parent=5 // pred_check
      %p233 = pneg %p232
    $region34: #{gram_matrix.1} parent=5 // pred_check_branch
      %235 = sbr.rel (%p233) target = $region36
    $region35: #{gram_matrix.1} parent=5 // pred_region
      %s236 = ssub.s32 %s7, 2
      // Predicated region
      $region37: #{gram_matrix.1} parent=35 // pred_check
        %p237 = pneg %p76
      $region38: #{gram_matrix.1} parent=35 // pred_check_branch
        %239 = sbr.rel (%p237) target = $region40
      $region39: #{gram_matrix.1} parent=35 // pred_region
        %p240 = scmp.lt.s32.totalorder %s18, 1
        %s241 = scalar_select %p240, %s18, 1
        %s242 = smul.addr %s241, 8
        %s243 = scalar_lea.vmem %s1, %s242
      $region40: #{gram_matrix.1} parent=35 // pred_fallthru
        _
    $region36: #{gram_matrix.1} parent=5 // pred_fallthru
      _
  $region6: #{gram_matrix.1} parent=0 // loop_footer
    %s11 = sadd.s32 1, %s7
  $region7: #{gram_matrix.1} parent=0 // loop_footer_branch
    %6 = sbr.rel target = $region3
  $region8: #{gram_matrix.1} parent=0 // loop_exit
    _

</llo_original>
